<compile_context>
chip_gen: v7x
topology: tpu7x:2x2x1
jax: 0.10.0
libtpu: 0.0.40
codegen_flags: <defaults>
</compile_context>

<pallas_src>
import functools

import jax
import jax.numpy as jnp
from jax.experimental import pallas as pl
from jax.experimental.pallas import tpu as pltpu

SUBLANE = 8          # f32 sublane pack (second-minor block dim must be a multiple)
BATCH_TILE = 16384   # rows per grid step: 16384 x 10 f32 = 640 KiB per buffer


def _mlp_kernel(x_ref, w_ref, b_ref, o_ref):
    # x_ref: (tile, IN)   w_ref: (IN, OUT) == W^T   b_ref: (1, OUT)   o_ref: (tile, OUT)
    y = jnp.dot(x_ref[...], w_ref[...], preferred_element_type=jnp.float32)
    o_ref[...] = jnp.maximum(y + b_ref[...], 0.0).astype(o_ref.dtype)


def prepare_params(weight, bias):
    """Hoist per-call work: transpose PyTorch-layout params once.

    weight: (OUT, IN) as nn.Linear stores it; bias: (OUT,)
    returns w_t: (IN, OUT) == W^T, b2d: (1, OUT)
    """
    return weight.T, bias.reshape(1, -1)


def _round_up(n, m):
    return ((n + m - 1) // m) * m


@functools.partial(jax.jit, static_argnames=("batch_tile",))
def mlp_forward(x, w_t, b2d, *, batch_tile=BATCH_TILE):
    """relu(x @ W^T + b).  x: (B, IN) f32, params from prepare_params."""
    B, in_f = x.shape
    out_f = w_t.shape[1]

    tile = min(batch_tile, _round_up(B, SUBLANE))   # multiple of 8 by construction
    grid = pl.cdiv(B, tile)                         # ragged tail handled by Pallas

    cost = pl.CostEstimate(
        flops=2 * B * in_f * out_f,
        transcendentals=0,
        bytes_accessed=(B * in_f + B * out_f + in_f * out_f + out_f) * x.dtype.itemsize,
    )

    return pl.pallas_call(
        _mlp_kernel,
        out_shape=jax.ShapeDtypeStruct((B, out_f), x.dtype),
        grid=(grid,),
        in_specs=[
            pl.BlockSpec((tile, in_f), lambda i: (i, 0)),     # 10-wide rows, lane-sparse but minimal HBM bytes
            pl.BlockSpec((in_f, out_f), lambda i: (0, 0)),    # W^T stays VMEM-resident
            pl.BlockSpec((1, out_f), lambda i: (0, 0)),       # bias stays VMEM-resident
        ],
        out_specs=pl.BlockSpec((tile, out_f), lambda i: (i, 0)),
        compiler_params=pltpu.CompilerParams(
            # Independent batch rows, no cross-step state -> megacore-shardable on
            # v7x; a no-op on single-TensorCore v5e/v6e.
            dimension_semantics=("parallel",),
        ),
        cost_estimate=cost,
    )(x, w_t, b2d)


if __name__ == "__main__":
    key = jax.random.PRNGKey(0)
    k_x, k_w, k_b, k_x2 = jax.random.split(key, 4)

    B, IN, OUT = 8, 10, 10

    # Deterministic parameter init (mimics nn.Linear's U(-1/sqrt(in), 1/sqrt(in)))
    bound = 1.0 / jnp.sqrt(jnp.float32(IN))
    weight = jax.random.uniform(k_w, (OUT, IN), jnp.float32, -bound, bound)
    bias = jax.random.uniform(k_b, (OUT,), jnp.float32, -bound, bound)

    # Transpose / reshape parameters ONCE (hoisted out of the per-call path).
    w_t, b2d = prepare_params(weight, bias)

    # Small-batch path: single block, single dispatch, no padding anywhere.
    x = jax.random.normal(k_x, (B, IN), jnp.float32)
    out = jax.block_until_ready(mlp_forward(x, w_t, b2d))
    ref = jnp.maximum(x @ weight.T + bias, 0.0)
    assert out.shape == (B, OUT)
    assert jnp.allclose(out, ref, atol=1e-5, rtol=1e-5)

    # Multi-step grid with a ragged final block (small shapes: 1061 rows, tile=256).
    Bb = 1061
    xb = jax.random.normal(k_x2, (Bb, IN), jnp.float32)
    outb = jax.block_until_ready(mlp_forward(xb, w_t, b2d, batch_tile=256))
    refb = jnp.maximum(xb @ weight.T + bias, 0.0)
    assert outb.shape == (Bb, OUT)
    assert jnp.allclose(outb, refb, atol=1e-5, rtol=1e-5)

    print("KERNEL_OK")
</pallas_src>

<mosaic_0001>
module attributes {stable_mosaic.version = 11 : i64} {
  func.func @_mlp_kernel(%arg0: i32, %arg1: memref<8x10xf32, #tpu.memory_space<vmem>>, %arg2: memref<10x10xf32, #tpu.memory_space<vmem>>, %arg3: memref<1x10xf32, #tpu.memory_space<vmem>>, %arg4: memref<8x10xf32, #tpu.memory_space<vmem>>) attributes {dimension_semantics = [#tpu.dimension_semantics<parallel>], iteration_bounds = array<i64: 1>, scalar_prefetch = 0 : i64, scratch_operands = 0 : i64, tpu.core_type = #tpu.core_type<tc>, window_params = [{transform_indices = @transform_0, window_bounds = array<i64: 8, 10>}, {pipeline_mode = #tpu.pipeline_mode<synchronous>, transform_indices = @transform_1, window_bounds = array<i64: 10, 10>}, {pipeline_mode = #tpu.pipeline_mode<synchronous>, transform_indices = @transform_2, window_bounds = array<i64: 1, 10>}, {transform_indices = @transform_3, window_bounds = array<i64: 8, 10>}]} {
    %c0 = arith.constant 0 : index
    %c0_0 = arith.constant 0 : index
    %0 = vector.load %arg1[%c0, %c0_0] : memref<8x10xf32, #tpu.memory_space<vmem>>, vector<8x10xf32>
    %c0_1 = arith.constant 0 : index
    %c0_2 = arith.constant 0 : index
    %1 = vector.load %arg2[%c0_1, %c0_2] : memref<10x10xf32, #tpu.memory_space<vmem>>, vector<10x10xf32>
    %cst = arith.constant dense<0.000000e+00> : vector<8x10xf32>
    %2 = tpu.matmul %0, %1, %cst {dimension_numbers = #tpu.dot_dimension_numbers<[1], [0], [0], [1], [0, 0, 1, 1], [], []>} : vector<8x10xf32>, vector<10x10xf32>, vector<8x10xf32> -> vector<8x10xf32>
    %c0_3 = arith.constant 0 : index
    %c0_4 = arith.constant 0 : index
    %3 = vector.load %arg3[%c0_3, %c0_4] : memref<1x10xf32, #tpu.memory_space<vmem>>, vector<1x10xf32>
    %4 = vector.broadcast %3 : vector<1x10xf32> to vector<8x10xf32>
    %5 = arith.addf %2, %4 : vector<8x10xf32>
    %cst_5 = arith.constant 0.000000e+00 : f32
    %6 = vector.broadcast %cst_5 : f32 to vector<8x10xf32>
    %7 = arith.maximumf %5, %6 : vector<8x10xf32>
    %c0_6 = arith.constant 0 : index
    %c0_7 = arith.constant 0 : index
    %8 = vector.load %arg4[%c0_6, %c0_7] : memref<8x10xf32, #tpu.memory_space<vmem>>, vector<8x10xf32>
    tpu.vector_store %arg4[%c0_6, %c0_7], %7 {strides = array<i32>} : memref<8x10xf32, #tpu.memory_space<vmem>>, vector<8x10xf32>,
    return
  }
  func.func @transform_0(%arg0: i32) -> (i32, i32) {
    %c0_i32 = arith.constant 0 : i32
    %c0_i32_0 = arith.constant 0 : i32
    return %arg0, %c0_i32 : i32, i32
  }
  func.func @transform_1(%arg0: i32) -> (i32, i32) {
    %c0_i32 = arith.constant 0 : i32
    %c0_i32_0 = arith.constant 0 : i32
    %c0_i32_1 = arith.constant 0 : i32
    return %c0_i32, %c0_i32_0 : i32, i32
  }
  func.func @transform_2(%arg0: i32) -> (i32, i32) {
    %c0_i32 = arith.constant 0 : i32
    %c0_i32_0 = arith.constant 0 : i32
    %c0_i32_1 = arith.constant 0 : i32
    return %c0_i32, %c0_i32_0 : i32, i32
  }
  func.func @transform_3(%arg0: i32) -> (i32, i32) {
    %c0_i32 = arith.constant 0 : i32
    %c0_i32_0 = arith.constant 0 : i32
    return %arg0, %c0_i32 : i32, i32
  }
}

</mosaic_0001>

<llo_original>
// kernel: mlp_forward.1
$region0: #{mlp_forward.1}
  #allocation0 [shape = 'u32[]', space=smem, size = 0x4, offset = 0x4, fixed_abs, tag = 'smem constant byte address 0x4 - core index']
  #allocation1 [shape = 'u32[144,128]{1,0:T(1,128)}', space=vmem, size = 0x12000, scoped, tag = 'internal scratch']
  %s0 = inlined_call_operand.hbm [shape: f32[8,10], index: 0, kind: input, shape index: {}]
  %s1 = inlined_call_operand.hbm [shape: f32[10,10], index: 1, kind: input, shape index: {}]
  %s2 = inlined_call_operand.vmem [shape: f32[1,10], index: 2, kind: input, shape index: {}]
  %s3 = inlined_call_operand.hbm [shape: f32[8,10], index: 3, kind: output, shape index: {}]
  %s4 = sld [smem:[#allocation0]]
  $region30: #{mlp_forward.1} parent=0
    _
  %s6 = ssub.s32 1, %s4
  %s7 = scalar_select 0, %s6, %s4
  $region1: #{mlp_forward.1} parent=0
    #allocation2 [shape = 'u8[4096]{0}', space=vmem, size = 0x1000, scoped, tag = 'input window, operand 0, single buffered']
    #allocation3 [shape = 's32[1]{0}', space=sflag, size = 0x4, scoped, tag = 'scoped memory for mlp_forward.1']
    #allocation4 [shape = 's32[1]{0}', space=sflag, size = 0x4, scoped, tag = 'scoped memory for mlp_forward.1']
    #allocation5 [shape = 'u8[8192]{0}', space=vmem, size = 0x2000, scoped, tag = 'input window, operand 1, single buffered']
    #allocation6 [shape = 's32[1]{0}', space=sflag, size = 0x4, scoped, tag = 'scoped memory for mlp_forward.1']
    #allocation7 [shape = 'u8[4096]{0}', space=vmem, size = 0x1000, scoped, tag = 'output window, operand 0, single buffered']
    %8 = vsyncpa [#allocation3], 0
    %9 = vsyncpa [#allocation6], 0
    %10 = vsyncpa [#allocation4], 0
    // Predicated region
    $region2: #{mlp_forward.1} parent=1 // pred_check
      _
    $region3: #{mlp_forward.1} parent=1 // pred_check_branch
      %12 = sbr.rel (0) target = $region5
    $region4: #{mlp_forward.1} parent=1 // pred_region
      %s14 = ssub.s32 128, 128
      %15 = vsyncadd [#allocation3], %s14
      %s17 = sshll.u32 [#allocation2], 4
      %s18 = int_to_ptr.vmem [resolvable:$true] %s17
      %20 = dma.hbm_to_vmem [thread:$0]  %s0, 128, %s18, [#allocation3]
    $region5: #{mlp_forward.1} parent=1 // pred_fallthru
      _
    // Predicated region
    $region6: #{mlp_forward.1} parent=1 // pred_check
      _
    $region7: #{mlp_forward.1} parent=1 // pred_check_branch
      %22 = sbr.rel (0) target = $region9
    $region8: #{mlp_forward.1} parent=1 // pred_region
      %s24 = ssub.s32 256, 256
      %25 = vsyncadd [#allocation6], %s24
      %s26 = sshll.u32 [#allocation5], 4
      %s27 = int_to_ptr.vmem [resolvable:$true] %s26
      %32 = dma.hbm_to_vmem [thread:$0]  %s1, 256, %s27, [#allocation6], 128, 128, 8
    $region9: #{mlp_forward.1} parent=1 // pred_fallthru
      _
    // Predicated region
    $region10: #{mlp_forward.1} parent=1 // pred_check
      _
    $region11: #{mlp_forward.1} parent=1 // pred_check_branch
      %34 = sbr.rel (0) target = $region13
    $region12: #{mlp_forward.1} parent=1 // pred_region
      _
    $region13: #{mlp_forward.1} parent=1 // pred_fallthru
      _
    // Predicated region
    $region14: #{mlp_forward.1} parent=1 // pred_check
      _
    $region15: #{mlp_forward.1} parent=1 // pred_check_branch
      %36 = sbr.rel (0) target = $region17
    $region16: #{mlp_forward.1} parent=1 // pred_region
      %37 = dma.done [#allocation3], 128
    $region17: #{mlp_forward.1} parent=1 // pred_fallthru
      _
    // Predicated region
    $region18: #{mlp_forward.1} parent=1 // pred_check
      _
    $region19: #{mlp_forward.1} parent=1 // pred_check_branch
      %39 = sbr.rel (0) target = $region21
    $region20: #{mlp_forward.1} parent=1 // pred_region
      %40 = dma.done [#allocation6], 256
    $region21: #{mlp_forward.1} parent=1 // pred_fallthru
      _
    %v41 = vld [vmem:[#allocation2] sm:$0xff]
    %v42 = vld [vmem:[#allocation5] sm:$0xff]
    %v43 = vld [vmem:[#allocation5 + $0x8] sm:$0x3]
    %v44 = vld [vmem:[%s2] sm:$0x1]
    %v46 = vlaneseq
    %v47 = vshrl.u32 %v46, 7
    %v48 = vsub.s32 0, %v47
    %v49 = vrot.slane %v44, %v48
    %vm51 = vcmask 80896
    %v53 = vsel %vm51, %v41, 0
    %vm55 = vcmask 1041408
    %v57 = vsel %vm55, %v43, 0
    %59 = vmatprep.subr.mxu0 0.0
    %60 = vmatpush1.msra.mxu0 %v42
    %61 = vmatprep.subr.mxu0 0.0
    %62 = vmatpush1.msra.mxu0 %v57
    %63 = vmatprep.subr.mxu0 0.0
    %64 = vmatpush1.msra.mxu0 0.0
    %65 = vmatprep.subr.mxu0 0.0
    %66 = vmatpush1.msra.mxu0 0.0
    %67 = vmatprep.subr.mxu0 0.0
    %68 = vmatpush1.msra.mxu0 0.0
    %69 = vmatprep.subr.mxu0 0.0
    %70 = vmatpush1.msra.mxu0 0.0
    %71 = vmatprep.subr.mxu0 0.0
    %72 = vmatpush1.msra.mxu0 0.0
    %73 = vmatprep.subr.mxu0 0.0
    %74 = vmatpush1.msra.mxu0 0.0
    %75 = vmatprep.subr.mxu0 0.0
    %76 = vmatpush1.msra.mxu0 0.0
    %77 = vmatprep.subr.mxu0 0.0
    %78 = vmatpush1.msra.mxu0 0.0
    %79 = vmatprep.subr.mxu0 0.0
    %80 = vmatpush1.msra.mxu0 0.0
    %81 = vmatprep.subr.mxu0 0.0
    %82 = vmatpush1.msra.mxu0 0.0
    %83 = vmatprep.subr.mxu0 0.0
    %84 = vmatpush1.msra.mxu0 0.0
    %85 = vmatprep.subr.mxu0 0.0
    %86 = vmatpush1.msra.mxu0 0.0
    %87 = vmatprep.subr.mxu0 0.0
    %88 = vmatpush1.msra.mxu0 0.0
    %89 = vmatprep.subr.mxu0 0.0
    %90 = vmatpush1.msra.mxu0 0.0
    %91 = vmatprep.subr.mxu0 0.0
    %92 = vmatpush1.msra.mxu0 0.0
    %93 = vmatprep.subr.mxu0 0.0
    %94 = vmatpush1.msra.mxu0 0.0
    %95 = vmatprep.subr.mxu0 0.0
    %96 = vmatpush1.msra.mxu0 0.0
    %97 = vmatprep.subr.mxu0 0.0
    %98 = vmatpush1.msra.mxu0 0.0
    %99 = vmatprep.subr.mxu0 0.0
    %100 = vmatpush1.msra.mxu0 0.0
    %101 = vmatprep.subr.mxu0 0.0
    %102 = vmatpush1.msra.mxu0 0.0
    %103 = vmatprep.subr.mxu0 0.0
    %104 = vmatpush1.msra.mxu0 0.0
    %105 = vmatprep.subr.mxu0 0.0
    %106 = vmatpush1.msra.mxu0 0.0
    %107 = vmatprep.subr.mxu0 0.0
    %108 = vmatpush1.msra.mxu0 0.0
    %109 = vmatprep.subr.mxu0 0.0
    %110 = vmatpush1.msra.mxu0 0.0
    %111 = vmatprep.subr.mxu0 0.0
    %112 = vmatpush1.msra.mxu0 0.0
    %113 = vmatprep.subr.mxu0 0.0
    %114 = vmatpush1.msra.mxu0 0.0
    %115 = vmatprep.subr.mxu0 0.0
    %116 = vmatpush1.msra.mxu0 0.0
    %117 = vmatprep.subr.mxu0 0.0
    %118 = vmatpush1.msra.mxu0 0.0
    %119 = vmatprep.subr.mxu0 0.0
    %120 = vmatpush1.msra.mxu0 0.0
    %121 = vmatprep.subr.mxu0 0.0
    %122 = vmatpush1.msra.mxu0 0.0
    %123 = vmatprep.mubr.f32.mxu0 0.0
    %124 = vmatmul.mubr.f32.gmra.mrb[0].mxu0 %v53
    %v125 = vpop.f32.mrb[0].mxu0
    %v126 = vadd.f32 %v49, %v125
    %v127 = vpop.f32.mrb[0].mxu0
    %128 = vdwg.mxu0
    %v129 = vmax.f32 %v126, 0.0
    %130 = vst.msk [vmem:[#allocation7] sm:$0xff] %vm51, %v129
    // Predicated region
    $region22: #{mlp_forward.1} parent=1 // pred_check
      _
    $region23: #{mlp_forward.1} parent=1 // pred_check_branch
      %132 = sbr.rel (0) target = $region25
    $region24: #{mlp_forward.1} parent=1 // pred_region
      %s134 = ssub.s32 128, 128
      %135 = vsyncadd [#allocation4], %s134
      %s137 = sshll.u32 [#allocation7], 4
      %s138 = int_to_ptr.vmem [resolvable:$true] %s137
      %140 = dma.vmem_to_hbm [thread:$0]  %s138, 128, %s3, [#allocation4]
    $region25: #{mlp_forward.1} parent=1 // pred_fallthru
      _
    // Predicated region
    $region26: #{mlp_forward.1} parent=1 // pred_check
      _
    $region27: #{mlp_forward.1} parent=1 // pred_check_branch
      %142 = sbr.rel (0) target = $region29
    $region28: #{mlp_forward.1} parent=1 // pred_region
      %143 = dma.done [#allocation4], 128
    $region29: #{mlp_forward.1} parent=1 // pred_fallthru
      _
    %144 = vsyncpa [#allocation3], 1
    %145 = vsyncpa [#allocation6], 1
    %146 = vsyncpa [#allocation4], 1

</llo_original>
